<compile_context>
chip_gen: v5e
topology: v5e:2x2
jax: 0.10.0
libtpu: 0.0.40
codegen_flags: <defaults>
</compile_context>

<pallas_src>
import jax
import jax.numpy as jnp
from jax.experimental import pallas as pl
from jax.experimental.pallas import tpu as pltpu

_LANE = 128
_TARGET_TILE_BYTES = 2 * 1024 * 1024  # ~2 MiB/block: pipelines near HBM roofline
                                      # and fits v5e's 16 MiB scoped VMEM with
                                      # (in + out) x double-buffer = ~8 MiB.


def _copy_kernel(x_ref, o_ref):
    # A reshape moves no data; the only device work is this identity copy of
    # the current tile through VMEM (pure DMA-bound).
    o_ref[...] = x_ref[...]


def _slab_plan(total, itemsize):
    """Pick a lane-dense 2D view (rows, W) of the flat contiguous buffer plus
    a tile-row count TR. W is the widest multiple of 128 that divides `total`
    exactly, so no padding / concat / tail-slice is ever needed.
    Returns None if the element count is not 128-lane aligned."""
    if total == 0:
        return None
    # dtype-aware minimum sublane count: 8 (f32), 16 (bf16), 32 (int8/fp8).
    sublanes = max(8, 32 // itemsize)
    W = None
    for cand in (4096, 2048, 1024, 512, 256, _LANE):  # widest lane-dense W wins
        if total % cand == 0:
            W = cand
            break
    if W is None:
        return None
    rows = total // W
    if rows * W * itemsize <= _TARGET_TILE_BYTES:
        # Whole array fits in one block; block dims == array dims is always legal.
        return rows, W, rows
    tr = max(sublanes, _TARGET_TILE_BYTES // (W * itemsize))
    tr -= tr % sublanes  # keep tile rows sublane-aligned for the dtype
    return rows, W, min(tr, rows)


def pallas_reshape(x: jnp.ndarray, shape) -> jnp.ndarray:
    """torch.Tensor.reshape(shape) with the (only) HBM pass done by a Pallas
    identity-copy kernel; the shape change itself is metadata-only."""
    # Mirrors the `print(x.size())` in the PyTorch forward.
    # (Under jit this fires at trace time, once per shape, not per call.)
    print(tuple(x.shape))

    shape = tuple(shape)
    total = x.size
    itemsize = jnp.dtype(x.dtype).itemsize

    plan = _slab_plan(total, itemsize)
    if plan is None:
        # Element count not 128-aligned: any padded copy would add extra HBM
        # passes around a semantically free op, so use the metadata-only
        # reshape directly (exact and fastest).
        return jnp.reshape(x, shape)

    rows, W, tr = plan
    slab = x.reshape(rows, W)  # metadata-only view of the contiguous buffer

    copied = pl.pallas_call(
        _copy_kernel,
        out_shape=jax.ShapeDtypeStruct((rows, W), x.dtype),
        grid=(pl.cdiv(rows, tr),),
        in_specs=[pl.BlockSpec((tr, W), lambda i: (i, 0))],
        out_specs=pl.BlockSpec((tr, W), lambda i: (i, 0)),
        # Logically an identity: let the output alias the input buffer (XLA
        # only inserts a copy if the input must stay live elsewhere).
        input_output_aliases={0: 0},
        compiler_params=pltpu.CompilerParams(
            # Independent row tiles -> shardable across v7x's two TensorCores;
            # harmless no-op on single-core v5e / v6e.
            dimension_semantics=("parallel",),
            # Explicit, generation-portable VMEM budget (fits v7x's 64 MiB
            # physical); actual use is ~8 MiB with 2 MiB tiles.
            vmem_limit_bytes=32 * 1024 * 1024,
        ),
        # Purely memory-bound custom call: tell XLA so it can schedule
        # neighbouring ops around it.
        cost_estimate=pl.CostEstimate(
            flops=0, transcendentals=0, bytes_accessed=2 * total * itemsize),
    )(slab)

    return copied.reshape(shape)  # metadata-only


class Reshape:
    """JAX/Pallas equivalent of the PyTorch Reshape module."""

    def __init__(self, shape):
        self.shape = shape

    def __call__(self, x):
        return pallas_reshape(x, self.shape)


if __name__ == "__main__":
    key = jax.random.PRNGKey(0)
    # Small NCHW input consistent with the module's generic forward.
    x = jax.random.normal(key, (2, 4, 16, 16), dtype=jnp.float32)

    target_shape = (2, 4 * 16 * 16)  # flatten channels + spatial per batch
    mod = Reshape(target_shape)

    y = mod(x)
    jax.block_until_ready(y)

    # Verify semantics against plain jnp.reshape (torch.reshape equivalent).
    ref = x.reshape(target_shape)
    assert y.shape == ref.shape, (y.shape, ref.shape)
    assert y.dtype == ref.dtype
    assert jnp.array_equal(y, ref), "Pallas reshape mismatch"

    print("KERNEL_OK")
</pallas_src>

<mosaic_0001>
module attributes {stable_mosaic.version = 11 : i64} {
  func.func @_copy_kernel(%arg0: i32, %arg1: memref<1x2048xf32, #tpu.memory_space<vmem>>, %arg2: memref<1x2048xf32, #tpu.memory_space<vmem>>) attributes {dimension_semantics = [#tpu.dimension_semantics<parallel>], iteration_bounds = array<i64: 1>, scalar_prefetch = 0 : i64, scratch_operands = 0 : i64, tpu.core_type = #tpu.core_type<tc>, window_params = [{transform_indices = @transform_0, window_bounds = array<i64: 1, 2048>}, {transform_indices = @transform_1, window_bounds = array<i64: 1, 2048>}]} {
    %c0 = arith.constant 0 : index
    %c0_0 = arith.constant 0 : index
    %0 = vector.load %arg1[%c0, %c0_0] : memref<1x2048xf32, #tpu.memory_space<vmem>>, vector<1x2048xf32>
    %c0_1 = arith.constant 0 : index
    %c0_2 = arith.constant 0 : index
    %1 = vector.load %arg2[%c0_1, %c0_2] : memref<1x2048xf32, #tpu.memory_space<vmem>>, vector<1x2048xf32>
    tpu.vector_store %arg2[%c0_1, %c0_2], %0 {strides = array<i32>} : memref<1x2048xf32, #tpu.memory_space<vmem>>, vector<1x2048xf32>,
    return
  }
  func.func @transform_0(%arg0: i32) -> (i32, i32) {
    %c0_i32 = arith.constant 0 : i32
    %c0_i32_0 = arith.constant 0 : i32
    return %arg0, %c0_i32 : i32, i32
  }
  func.func @transform_1(%arg0: i32) -> (i32, i32) {
    %c0_i32 = arith.constant 0 : i32
    %c0_i32_0 = arith.constant 0 : i32
    return %arg0, %c0_i32 : i32, i32
  }
}

</mosaic_0001>

<llo_original>
// kernel: tpu_custom_call.1
$region0: #{tpu_custom_call.1}
  #allocation0 [shape = 'u32[]', space=smem, size = 0x4, offset = 0x4, fixed_abs, tag = 'smem constant byte address 0x4 - core index']
  #allocation1 [shape = 'u32[72,128]{1,0:T(1,128)}', space=vmem, size = 0x9000, scoped, tag = 'internal scratch']
  %s0 = inlined_call_operand.hbm [shape: f32[1,2048], index: 0, kind: input, shape index: {}, may-alias: {0,1}]
  %s1 = inlined_call_operand.hbm [shape: f32[1,2048], index: 1, kind: output, shape index: {}, may-alias: {0,1}]
  %s2 = sld [smem:[#allocation0]]
  $region18: #{tpu_custom_call.1} parent=0
    _
  %s4 = ssub.s32 1, %s2
  %s5 = scalar_select 0, %s4, %s2
  $region1: #{tpu_custom_call.1} parent=0
    #allocation2 [shape = 'u8[8192]{0}', space=vmem, size = 0x2000, scoped, tag = 'input window, operand 0, single buffered']
    #allocation3 [shape = 's32[1]{0}', space=sflag, size = 0x4, scoped, tag = 'scoped memory for tpu_custom_call.1']
    #allocation4 [shape = 's32[1]{0}', space=sflag, size = 0x4, scoped, tag = 'scoped memory for tpu_custom_call.1']
    #allocation5 [shape = 'u8[8192]{0}', space=vmem, size = 0x2000, scoped, tag = 'output window, operand 0, single buffered']
    %6 = vsyncpa [#allocation3], 0
    %7 = vsyncpa [#allocation4], 0
    // Predicated region
    $region2: #{tpu_custom_call.1} parent=1 // pred_check
      _
    $region3: #{tpu_custom_call.1} parent=1 // pred_check_branch
      %9 = sbr.rel (0) target = $region5
    $region4: #{tpu_custom_call.1} parent=1 // pred_region
      %11 = vsyncadd [#allocation3], 0
      %s13 = sshll.u32 %s0, 4
      %s14 = int_to_ptr.hbm [resolvable:$true] %s13
      %s15 = sshll.u32 [#allocation2], 4
      %s16 = int_to_ptr.vmem [resolvable:$true] %s15
      %18 = dma.hbm_to_vmem [thread:$0]  %s14, 256, %s16, [#allocation3]
    $region5: #{tpu_custom_call.1} parent=1 // pred_fallthru
      _
    // Predicated region
    $region6: #{tpu_custom_call.1} parent=1 // pred_check
      _
    $region7: #{tpu_custom_call.1} parent=1 // pred_check_branch
      %20 = sbr.rel (0) target = $region9
    $region8: #{tpu_custom_call.1} parent=1 // pred_region
      %22 = dma.done [#allocation3], 256
    $region9: #{tpu_custom_call.1} parent=1 // pred_fallthru
      _
    %v23 = vld [vmem:[#allocation2] sm:$0xff]
    %v24 = vld [vmem:[#allocation2 + $0x8] sm:$0xff]
    %25 = vst [vmem:[#allocation5] sm:$0xff] %v23
    %26 = vst [vmem:[#allocation5 + $0x8] sm:$0xff] %v24
    // Predicated region
    $region10: #{tpu_custom_call.1} parent=1 // pred_check
      _
    $region11: #{tpu_custom_call.1} parent=1 // pred_check_branch
      %28 = sbr.rel (0) target = $region13
    $region12: #{tpu_custom_call.1} parent=1 // pred_region
      %30 = vsyncadd [#allocation4], 0
      %s32 = sshll.u32 [#allocation5], 4
      %s33 = int_to_ptr.vmem [resolvable:$true] %s32
      %s34 = sshll.u32 %s1, 4
      %s35 = int_to_ptr.hbm [resolvable:$true] %s34
      %37 = dma.vmem_to_hbm [thread:$0]  %s33, 256, %s35, [#allocation4]
    $region13: #{tpu_custom_call.1} parent=1 // pred_fallthru
      _
    // Predicated region
    $region14: #{tpu_custom_call.1} parent=1 // pred_check
      _
    $region15: #{tpu_custom_call.1} parent=1 // pred_check_branch
      %39 = sbr.rel (0) target = $region17
    $region16: #{tpu_custom_call.1} parent=1 // pred_region
      %41 = dma.done [#allocation4], 256
    $region17: #{tpu_custom_call.1} parent=1 // pred_fallthru
      _
    %42 = vsyncpa [#allocation3], 1
    %43 = vsyncpa [#allocation4], 1

</llo_original>
